<compile_context>
chip_gen: v7x
topology: tpu7x:2x2x1
jax: 0.10.0
libtpu: 0.0.40
codegen_flags: <defaults>
</compile_context>

<pallas_src>
import jax
import jax.numpy as jnp
from jax.experimental import pallas as pl
from jax.experimental.pallas import tpu as pltpu


def _sublane_pack(itemsize: int) -> int:
    # 8 rows for 32-bit, 16 for bf16, 32 for int8.
    return 8 * max(1, 4 // itemsize)


def _choose_tiles(B, S, H, itemsize, x_budget_bytes=24 * 1024 * 1024):
    """Pick (tB, tS) so that 2 * (tB * tS * H * itemsize) <= budget (double-buffered)."""
    tB = B if B <= 8 else 8
    pack = _sublane_pack(itemsize)
    per_row_bytes = tB * H * itemsize
    max_ts = max(pack, x_budget_bytes // (2 * per_row_bytes))
    tS = S if S <= max_ts else (max_ts // pack) * pack
    return tB, tS


def maxpool_sequence_classifier(hidden_states: jax.Array, weight: jax.Array,
                                seq_tile: int | None = None) -> jax.Array:
    """hidden_states: [B, S, H]; weight: [num_labels, hidden] (PyTorch nn.Linear layout)."""
    B, S, H = hidden_states.shape
    L = weight.shape[0]
    dtype = hidden_states.dtype
    itemsize = jnp.dtype(dtype).itemsize
    pack = _sublane_pack(itemsize)

    w_t = weight.T  # [H, L] — glue transpose outside the kernel; plain MXU matmul inside

    tB, tS = _choose_tiles(B, S, H, itemsize)
    if seq_tile is not None:
        tS = min(seq_tile, S)
        if tS < S:
            # Respect the (sublane-pack, lane) block constraint on the seq axis.
            tS = min(S, max(pack, ((tS + pack - 1) // pack) * pack))

    grid = (pl.cdiv(B, tB), pl.cdiv(S, tS))
    n_seq = grid[1]
    rem = S % tS  # valid rows in the last seq tile (0 => last tile fully valid)

    def kernel(x_ref, w_ref, o_ref, acc_ref):
        s = pl.program_id(1)

        @pl.when(s == 0)
        def _():
            acc_ref[...] = jnp.full(acc_ref.shape, -jnp.inf, dtype=acc_ref.dtype)

        def fold(x):  # x: [tB, rows, H]
            acc_ref[...] = jnp.maximum(acc_ref[...], jnp.max(x, axis=1))

        if rem == 0:
            fold(x_ref[...])
        else:
            # Only the last seq tile is ragged; use a static sub-slice instead of a
            # per-element mask so full tiles keep a pure load -> sublane-reduce path.
            @pl.when(s < n_seq - 1)
            def _():
                fold(x_ref[...])

            @pl.when(s == n_seq - 1)
            def _():
                fold(x_ref[:, :rem, :])

        @pl.when(s == n_seq - 1)
        def _():
            logits = jnp.dot(acc_ref[...], w_ref[...],
                             preferred_element_type=jnp.float32)  # [tB, L], f32 MXU acc
            o_ref[...] = logits.astype(o_ref.dtype)

    cost = pl.CostEstimate(
        flops=2 * B * H * L,
        transcendentals=0,
        bytes_accessed=B * S * H * itemsize + H * L * itemsize + B * L * itemsize,
    )

    return pl.pallas_call(
        kernel,
        out_shape=jax.ShapeDtypeStruct((B, L), dtype),
        grid_spec=pltpu.PrefetchScalarGridSpec(
            num_scalar_prefetch=0,
            grid=grid,
            in_specs=[
                pl.BlockSpec((tB, tS, H), lambda b, s: (b, s, 0)),
                # Same block index every step -> weight stays resident in VMEM.
                pl.BlockSpec((H, L), lambda b, s: (0, 0)),
            ],
            # Same output block across all seq steps -> resident accumulator pattern.
            out_specs=pl.BlockSpec((tB, L), lambda b, s: (b, 0)),
            scratch_shapes=[pltpu.VMEM((tB, H), dtype)],  # running max, input dtype
        ),
        compiler_params=pltpu.CompilerParams(
            dimension_semantics=("parallel", "arbitrary"),
            vmem_limit_bytes=40 * 1024 * 1024,
        ),
        cost_estimate=cost,
    )(hidden_states, w_t)


def reference(hidden_states, weight):
    pooled = jnp.max(hidden_states.astype(jnp.float32), axis=1)
    return pooled @ weight.astype(jnp.float32).T


if __name__ == "__main__":
    key = jax.random.PRNGKey(0)

    # --- Test 1: small shapes implied by the forward: [B, S, H] -> [B, L] ---
    B, S, H, L = 2, 8, 32, 4
    kx, kw, key = jax.random.split(key, 3)
    hidden_states = jax.random.normal(kx, (B, S, H), dtype=jnp.float32)
    bound = 1.0 / (H ** 0.5)  # nn.Linear default init: U(-1/sqrt(H), 1/sqrt(H)), shape [L, H]
    weight = jax.random.uniform(kw, (L, H), dtype=jnp.float32, minval=-bound, maxval=bound)
    out = jax.block_until_ready(maxpool_sequence_classifier(hidden_states, weight))
    ref = reference(hidden_states, weight)
    assert out.shape == (B, L), out.shape
    assert jnp.allclose(out, ref, atol=1e-5, rtol=1e-5), (out, ref)

    # --- Test 2: multi-tile seq grid (exercises the running-max accumulator) ---
    B2, S2, H2, L2 = 2, 32, 128, 4
    kx2, kw2, key = jax.random.split(key, 3)
    hs2 = jax.random.normal(kx2, (B2, S2, H2), dtype=jnp.float32)
    w2 = jax.random.uniform(kw2, (L2, H2), dtype=jnp.float32,
                            minval=-1.0 / (H2 ** 0.5), maxval=1.0 / (H2 ** 0.5))
    out2 = jax.block_until_ready(maxpool_sequence_classifier(hs2, w2, seq_tile=8))
    assert jnp.allclose(out2, reference(hs2, w2), atol=1e-5, rtol=1e-5)

    # --- Test 3: ragged seq (S % tile != 0) exercises the static-slice last tile ---
    B3, S3, H3, L3 = 2, 20, 128, 4
    kx3, kw3, key = jax.random.split(key, 3)
    hs3 = jax.random.normal(kx3, (B3, S3, H3), dtype=jnp.float32)
    w3 = jax.random.uniform(kw3, (L3, H3), dtype=jnp.float32,
                            minval=-1.0 / (H3 ** 0.5), maxval=1.0 / (H3 ** 0.5))
    out3 = jax.block_until_ready(maxpool_sequence_classifier(hs3, w3, seq_tile=8))
    assert jnp.allclose(out3, reference(hs3, w3), atol=1e-5, rtol=1e-5)

    # --- Test 4: bf16 streaming (16-row sublane packing), multi-tile ---
    B4, S4, H4, L4 = 4, 32, 128, 4
    kx4, kw4, key = jax.random.split(key, 3)
    hs4 = jax.random.normal(kx4, (B4, S4, H4), dtype=jnp.bfloat16)
    w4 = jax.random.uniform(kw4, (L4, H4), dtype=jnp.bfloat16,
                            minval=-1.0 / (H4 ** 0.5), maxval=1.0 / (H4 ** 0.5))
    out4 = jax.block_until_ready(maxpool_sequence_classifier(hs4, w4, seq_tile=16))
    assert jnp.allclose(out4.astype(jnp.float32), reference(hs4, w4), atol=1e-2, rtol=2e-2)

    # --- Test 5: batch larger than one batch tile (B > 8, ragged batch tile) ---
    B5, S5, H5, L5 = 10, 16, 128, 8
    kx5, kw5, key = jax.random.split(key, 3)
    hs5 = jax.random.normal(kx5, (B5, S5, H5), dtype=jnp.float32)
    w5 = jax.random.uniform(kw5, (L5, H5), dtype=jnp.float32,
                            minval=-1.0 / (H5 ** 0.5), maxval=1.0 / (H5 ** 0.5))
    out5 = jax.block_until_ready(maxpool_sequence_classifier(hs5, w5))
    assert jnp.allclose(out5, reference(hs5, w5), atol=1e-5, rtol=1e-5)

    print("KERNEL_OK")
</pallas_src>

<mosaic_0001>
module attributes {stable_mosaic.version = 11 : i64} {
  func.func @kernel(%arg0: i32, %arg1: i32, %arg2: memref<2x8x32xf32, #tpu.memory_space<vmem>>, %arg3: memref<32x4xf32, #tpu.memory_space<vmem>>, %arg4: memref<2x4xf32, #tpu.memory_space<vmem>>, %arg5: memref<2x32xf32, #tpu.memory_space<vmem>>) attributes {dimension_semantics = [#tpu.dimension_semantics<parallel>, #tpu.dimension_semantics<arbitrary>], iteration_bounds = array<i64: 1, 1>, scalar_prefetch = 0 : i64, scratch_operands = 1 : i64, tpu.core_type = #tpu.core_type<tc>, window_params = [{transform_indices = @transform_0, window_bounds = array<i64: 2, 8, 32>}, {pipeline_mode = #tpu.pipeline_mode<synchronous>, transform_indices = @transform_1, window_bounds = array<i64: 32, 4>}, {transform_indices = @transform_2, window_bounds = array<i64: 2, 4>}]} {
    %c0_i32 = arith.constant 0 : i32
    %0 = arith.cmpi eq, %arg1, %c0_i32 : i32
    %1 = arith.extui %0 : i1 to i32
    %c0_i32_0 = arith.constant 0 : i32
    %2 = arith.cmpi ne, %1, %c0_i32_0 : i32
    scf.if %2 {
      %cst_9 = arith.constant 0xFF800000 : f32
      %11 = vector.broadcast %cst_9 : f32 to vector<2x32xf32>
      %c0_10 = arith.constant 0 : index
      %c0_11 = arith.constant 0 : index
      %12 = vector.load %arg5[%c0_10, %c0_11] : memref<2x32xf32, #tpu.memory_space<vmem>>, vector<2x32xf32>
      tpu.vector_store %arg5[%c0_10, %c0_11], %11 {strides = array<i32>} : memref<2x32xf32, #tpu.memory_space<vmem>>, vector<2x32xf32>,
    } else {
    }
    %c0 = arith.constant 0 : index
    %c0_1 = arith.constant 0 : index
    %c0_2 = arith.constant 0 : index
    %3 = vector.load %arg2[%c0, %c0_1, %c0_2] : memref<2x8x32xf32, #tpu.memory_space<vmem>>, vector<2x8x32xf32>
    %c0_3 = arith.constant 0 : index
    %c0_4 = arith.constant 0 : index
    %4 = vector.load %arg5[%c0_3, %c0_4] : memref<2x32xf32, #tpu.memory_space<vmem>>, vector<2x32xf32>
    %cst = arith.constant dense<0xFF800000> : vector<2x32xf32>
    %5 = vector.multi_reduction <maximumf>, %3, %cst [1] : vector<2x8x32xf32> to vector<2x32xf32>
    %6 = arith.maximumf %4, %5 : vector<2x32xf32>
    %c0_5 = arith.constant 0 : index
    %c0_6 = arith.constant 0 : index
    %7 = vector.load %arg5[%c0_5, %c0_6] : memref<2x32xf32, #tpu.memory_space<vmem>>, vector<2x32xf32>
    tpu.vector_store %arg5[%c0_5, %c0_6], %6 {strides = array<i32>} : memref<2x32xf32, #tpu.memory_space<vmem>>, vector<2x32xf32>,
    %c0_i32_7 = arith.constant 0 : i32
    %8 = arith.cmpi eq, %arg1, %c0_i32_7 : i32
    %9 = arith.extui %8 : i1 to i32
    %c0_i32_8 = arith.constant 0 : i32
    %10 = arith.cmpi ne, %9, %c0_i32_8 : i32
    scf.if %10 {
      %c0_9 = arith.constant 0 : index
      %c0_10 = arith.constant 0 : index
      %11 = vector.load %arg5[%c0_9, %c0_10] : memref<2x32xf32, #tpu.memory_space<vmem>>, vector<2x32xf32>
      %c0_11 = arith.constant 0 : index
      %c0_12 = arith.constant 0 : index
      %12 = vector.load %arg3[%c0_11, %c0_12] : memref<32x4xf32, #tpu.memory_space<vmem>>, vector<32x4xf32>
      %cst_13 = arith.constant dense<0.000000e+00> : vector<2x4xf32>
      %13 = tpu.matmul %11, %12, %cst_13 {dimension_numbers = #tpu.dot_dimension_numbers<[1], [0], [0], [1], [0, 0, 1, 1], [], []>} : vector<2x32xf32>, vector<32x4xf32>, vector<2x4xf32> -> vector<2x4xf32>
      %c0_14 = arith.constant 0 : index
      %c0_15 = arith.constant 0 : index
      %14 = vector.load %arg4[%c0_14, %c0_15] : memref<2x4xf32, #tpu.memory_space<vmem>>, vector<2x4xf32>
      tpu.vector_store %arg4[%c0_14, %c0_15], %13 {strides = array<i32>} : memref<2x4xf32, #tpu.memory_space<vmem>>, vector<2x4xf32>,
    } else {
    }
    return
  }
  func.func @transform_0(%arg0: i32, %arg1: i32) -> (i32, i32, i32) {
    %c0_i32 = arith.constant 0 : i32
    %c0_i32_0 = arith.constant 0 : i32
    return %arg0, %arg1, %c0_i32 : i32, i32, i32
  }
  func.func @transform_1(%arg0: i32, %arg1: i32) -> (i32, i32) {
    %c0_i32 = arith.constant 0 : i32
    %c0_i32_0 = arith.constant 0 : i32
    %c0_i32_1 = arith.constant 0 : i32
    return %c0_i32, %c0_i32_0 : i32, i32
  }
  func.func @transform_2(%arg0: i32, %arg1: i32) -> (i32, i32) {
    %c0_i32 = arith.constant 0 : i32
    %c0_i32_0 = arith.constant 0 : i32
    return %arg0, %c0_i32 : i32, i32
  }
}

</mosaic_0001>

<llo_original>
// kernel: tpu_custom_call.1
$region0: #{tpu_custom_call.1}
  #allocation0 [shape = 'u32[]', space=smem, size = 0x4, offset = 0x4, fixed_abs, tag = 'smem constant byte address 0x4 - core index']
  #allocation1 [shape = 'u32[144,128]{1,0:T(1,128)}', space=vmem, size = 0x12000, scoped, tag = 'internal scratch']
  #allocation2 [shape = 'f32[2,32]{1,0:T(2,128)}', space=vmem, size = 0x400, scoped, tag = 'scratch operand']
  %s0 = inlined_call_operand.vmem [shape: f32[2,8,32], index: 0, kind: input, shape index: {}]
  %s1 = inlined_call_operand.vmem [shape: f32[32,4], index: 1, kind: input, shape index: {}]
  %s2 = inlined_call_operand.hbm [shape: f32[2,4], index: 2, kind: output, shape index: {}]
  %s3 = sld [smem:[#allocation0]]
  $region26: #{tpu_custom_call.1} parent=0
    _
  %s5 = ssub.s32 1, %s3
  %s6 = scalar_select 0, %s5, %s3
  $region1: #{tpu_custom_call.1} parent=0
    #allocation3 [shape = 'u8[1024]{0}', space=vmem, size = 0x400, scoped, tag = 'output window, operand 0, single buffered']
    #allocation4 [shape = 's32[1]{0}', space=sflag, size = 0x4, scoped, tag = 'scoped memory for tpu_custom_call.1']
    %7 = vsyncpa [#allocation4], 0
    // Predicated region
    $region2: #{tpu_custom_call.1} parent=1 // pred_check
      _
    $region3: #{tpu_custom_call.1} parent=1 // pred_check_branch
      %9 = sbr.rel (0) target = $region5
    $region4: #{tpu_custom_call.1} parent=1 // pred_region
      _
    $region5: #{tpu_custom_call.1} parent=1 // pred_fallthru
      _
    // Predicated region
    $region6: #{tpu_custom_call.1} parent=1 // pred_check
      _
    $region7: #{tpu_custom_call.1} parent=1 // pred_check_branch
      %11 = sbr.rel (0) target = $region9
    $region8: #{tpu_custom_call.1} parent=1 // pred_region
      _
    $region9: #{tpu_custom_call.1} parent=1 // pred_fallthru
      _
    %p12 = scmp.eq.s32.totalorder 0, 0
    // Predicated region
    $region10: #{tpu_custom_call.1} parent=1 // pred_check
      %p13 = pneg %p12
    $region11: #{tpu_custom_call.1} parent=1 // pred_check_branch
      %15 = sbr.rel (%p13) target = $region13
    $region12: #{tpu_custom_call.1} parent=1 // pred_region
      %vm16 = vcmask 254976
      %17 = vst.msk [vmem:[#allocation2] sm:$0x3] %vm16, -inf
    $region13: #{tpu_custom_call.1} parent=1 // pred_fallthru
      _
    %v18 = vld [vmem:[%s0] sm:$0xff]
    %v19 = vld [vmem:[%s0 + $0x8] sm:$0xff]
    %v20 = vld [vmem:[#allocation2] sm:$0x3]
    %vm21 = vcmask 261120
    %v22 = vsel %vm21, %v18, -inf
    %v23 = vrot.slane %v22, 4
    %v24 = vmax.f32 %v22, %v23
    %v25 = vrot.slane %v24, 2
    %v26 = vmax.f32 %v24, %v25
    %v27 = vrot.slane %v26, 1
    %v28 = vmax.f32 %v26, %v27
    %v29 = vsel %vm21, %v19, -inf
    %v30 = vrot.slane %v29, 4
    %v31 = vmax.f32 %v29, %v30
    %v32 = vrot.slane %v31, 2
    %v33 = vmax.f32 %v31, %v32
    %v34 = vrot.slane %v33, 1
    %v35 = vmax.f32 %v33, %v34
    %vm38 = vcmask 1041409
    %v39 = vsel %vm38, %v35, %v28
    %v41 = vmax.f32 %v20, %v39
    %vm42 = vcmask 254976
    %43 = vst.msk [vmem:[#allocation2] sm:$0x3] %vm42, %v41
    // Predicated region
    $region14: #{tpu_custom_call.1} parent=1 // pred_check
      %p44 = pneg %p12
    $region15: #{tpu_custom_call.1} parent=1 // pred_check_branch
      %46 = sbr.rel (%p44) target = $region17
    $region16: #{tpu_custom_call.1} parent=1 // pred_region
      %v47 = vld [vmem:[#allocation2] sm:$0x3]
      %v48 = vld [vmem:[%s1] sm:$0xff]
      %v49 = vld [vmem:[%s1 + $0x8] sm:$0xff]
      %v50 = vld [vmem:[%s1 + $0x10] sm:$0xff]
      %v51 = vld [vmem:[%s1 + $0x18] sm:$0xff]
      %v53 = vsel %vm21, %v47, 0
      %55 = vmatprep.subr.mxu0 0.0
      %56 = vmatpush1.msra.mxu0 %v48
      %57 = vmatprep.subr.mxu0 0.0
      %58 = vmatpush1.msra.mxu0 %v49
      %59 = vmatprep.subr.mxu0 0.0
      %60 = vmatpush1.msra.mxu0 %v50
      %61 = vmatprep.subr.mxu0 0.0
      %62 = vmatpush1.msra.mxu0 %v51
      %63 = vmatprep.subr.mxu0 0.0
      %64 = vmatpush1.msra.mxu0 0.0
      %65 = vmatprep.subr.mxu0 0.0
      %66 = vmatpush1.msra.mxu0 0.0
      %67 = vmatprep.subr.mxu0 0.0
      %68 = vmatpush1.msra.mxu0 0.0
      %69 = vmatprep.subr.mxu0 0.0
      %70 = vmatpush1.msra.mxu0 0.0
      %71 = vmatprep.subr.mxu0 0.0
      %72 = vmatpush1.msra.mxu0 0.0
      %73 = vmatprep.subr.mxu0 0.0
      %74 = vmatpush1.msra.mxu0 0.0
      %75 = vmatprep.subr.mxu0 0.0
      %76 = vmatpush1.msra.mxu0 0.0
      %77 = vmatprep.subr.mxu0 0.0
      %78 = vmatpush1.msra.mxu0 0.0
      %79 = vmatprep.subr.mxu0 0.0
      %80 = vmatpush1.msra.mxu0 0.0
      %81 = vmatprep.subr.mxu0 0.0
      %82 = vmatpush1.msra.mxu0 0.0
      %83 = vmatprep.subr.mxu0 0.0
      %84 = vmatpush1.msra.mxu0 0.0
      %85 = vmatprep.subr.mxu0 0.0
      %86 = vmatpush1.msra.mxu0 0.0
      %87 = vmatprep.subr.mxu0 0.0
      %88 = vmatpush1.msra.mxu0 0.0
      %89 = vmatprep.subr.mxu0 0.0
      %90 = vmatpush1.msra.mxu0 0.0
      %91 = vmatprep.subr.mxu0 0.0
      %92 = vmatpush1.msra.mxu0 0.0
      %93 = vmatprep.subr.mxu0 0.0
      %94 = vmatpush1.msra.mxu0 0.0
      %95 = vmatprep.subr.mxu0 0.0
      %96 = vmatpush1.msra.mxu0 0.0
      %97 = vmatprep.subr.mxu0 0.0
      %98 = vmatpush1.msra.mxu0 0.0
      %99 = vmatprep.subr.mxu0 0.0
      %100 = vmatpush1.msra.mxu0 0.0
      %101 = vmatprep.subr.mxu0 0.0
      %102 = vmatpush1.msra.mxu0 0.0
      %103 = vmatprep.subr.mxu0 0.0
      %104 = vmatpush1.msra.mxu0 0.0
      %105 = vmatprep.subr.mxu0 0.0
      %106 = vmatpush1.msra.mxu0 0.0
      %107 = vmatprep.subr.mxu0 0.0
      %108 = vmatpush1.msra.mxu0 0.0
      %109 = vmatprep.subr.mxu0 0.0
      %110 = vmatpush1.msra.mxu0 0.0
      %111 = vmatprep.subr.mxu0 0.0
      %112 = vmatpush1.msra.mxu0 0.0
      %113 = vmatprep.subr.mxu0 0.0
      %114 = vmatpush1.msra.mxu0 0.0
      %115 = vmatprep.subr.mxu0 0.0
      %116 = vmatpush1.msra.mxu0 0.0
      %117 = vmatprep.subr.mxu0 0.0
      %118 = vmatpush1.msra.mxu0 0.0
      %119 = vmatprep.mubr.f32.mxu0 0.0
      %120 = vmatmul.mubr.f32.gmra.mrb[0].mxu0 %v53
      %v121 = vpop.f32.mrb[0].mxu0
      %v122 = vadd.f32 0.0, %v121
      %v123 = vpop.f32.mrb[0].mxu0
      %124 = vdwg.mxu0
      %vm125 = vcmask 25600
      %126 = vst.msk [vmem:[#allocation3] sm:$0x3] %vm125, %v122
    $region17: #{tpu_custom_call.1} parent=1 // pred_fallthru
      _
    // Predicated region
    $region18: #{tpu_custom_call.1} parent=1 // pred_check
      _
    $region19: #{tpu_custom_call.1} parent=1 // pred_check_branch
      %128 = sbr.rel (0) target = $region21
    $region20: #{tpu_custom_call.1} parent=1 // pred_region
      %s130 = ssub.s32 32, 32
      %131 = vsyncadd [#allocation4], %s130
      %s133 = sshll.u32 [#allocation3], 4
      %s134 = int_to_ptr.vmem [resolvable:$true] %s133
      %136 = dma.vmem_to_hbm [thread:$0]  %s134, 32, %s2, [#allocation4]
    $region21: #{tpu_custom_call.1} parent=1 // pred_fallthru
      _
    // Predicated region
    $region22: #{tpu_custom_call.1} parent=1 // pred_check
      _
    $region23: #{tpu_custom_call.1} parent=1 // pred_check_branch
      %138 = sbr.rel (0) target = $region25
    $region24: #{tpu_custom_call.1} parent=1 // pred_region
      %139 = dma.done [#allocation4], 32
    $region25: #{tpu_custom_call.1} parent=1 // pred_fallthru
      _
    %140 = vsyncpa [#allocation4], 1

</llo_original>
